<compile_context>
chip_gen: v5e
topology: v5e:2x2
jax: 0.10.0
libtpu: 0.0.40
codegen_flags: <defaults>
</compile_context>

<pallas_src>
import jax
import jax.numpy as jnp
from jax.experimental import pallas as pl
from jax.experimental.pallas import tpu as pltpu


def _bmm_kernel(x_ref, y_ref, o_ref):
    """One (bc, i) output row-panel: (tm, K) x (K, N) -> (tm, N) in one MXU pass.

    When y arrives in bf16 (bf16-MXU path), x is cast to bf16 inside the kernel so
    the cast hides under the x-panel DMA instead of costing an extra HBM pass in
    the wrapper. Accumulation is always f32 (preferred_element_type).
    """
    x = x_ref[0]
    if y_ref.dtype == jnp.bfloat16 and x.dtype != jnp.bfloat16:
        x = x.astype(jnp.bfloat16)
    o_ref[0] = jnp.dot(x, y_ref[0], preferred_element_type=jnp.float32).astype(o_ref.dtype)


def _vmem_capacity_bytes():
    """Physical per-core VMEM; conservative v7x-sized default if the query fails."""
    try:
        return int(pltpu.get_tpu_info().vmem_capacity_bytes)
    except Exception:
        return 64 * 1024 * 1024


def _pick_tm(M, K, N, x_isize, y_isize, o_isize, budget_bytes):
    """Row-panel height: sublane-aligned, fits the VMEM budget with y single-buffered."""
    align = 16 if x_isize == 2 else 8  # bf16 x packs (16,128); f32 packs (8,128).

    def need(tm):
        # x panel + out panel double-buffered; resident y single-buffered.
        return 2 * tm * (K * x_isize + N * o_isize) + K * N * y_isize

    if M <= align or need(M) <= budget_bytes:
        return M  # whole-M block; block dim == full array dim is always legal.

    # Largest sublane-aligned divisor of M within budget (no partial tiles).
    best = 0
    for tm in range(align, M, align):
        if M % tm == 0 and need(tm) <= budget_bytes and tm > best:
            best = tm
    if best:
        return best

    # No aligned divisor fits: largest aligned tile under budget; the grid uses
    # cdiv and Pallas masks the partial final row-panel.
    tm = align
    while tm + align < M and need(tm + align) <= budget_bytes:
        tm += align
    return tm


def batched_matmul(x, y, *, use_bf16_mxu=False):
    """x: (B, C, M, K), y: (B, C, K, N) -> (B, C, M, N), matching torch.matmul.

    use_bf16_mxu=True runs the MXU in bf16 with f32 accumulation (~1.3-1.5x on
    v6e/v7x, 2-4x on v5e for large contractions) at bf16-input accuracy
    (~1e-2-level relative error). Default False keeps strict f32 numerics.
    """
    B, C, M, K = x.shape
    B2, C2, K2, N = y.shape
    assert (B, C, K) == (B2, C2, K2)

    out_dtype = x.dtype

    # Glue: collapse batch dims so the kernel grid is simple.
    x2 = x.reshape(B * C, M, K)
    y2 = y.reshape(B * C, K, N)
    if use_bf16_mxu:
        # y is small (K*N per batch) so a wrapper-side cast is cheap; x stays f32
        # in HBM and is cast in-kernel (no extra HBM pass over the big operand).
        y2 = y2.astype(jnp.bfloat16)
    # TODO(synk): the remaining lever once HBM-bound is the caller supplying x
    # already in bf16 (halves the dominant HBM stream); kept f32 here for fidelity.

    x_isize = jnp.dtype(x2.dtype).itemsize
    y_isize = jnp.dtype(y2.dtype).itemsize
    o_isize = jnp.dtype(out_dtype).itemsize

    # Generation-aware block budget: ~55% of physical VMEM leaves headroom for
    # Mosaic internal scratch and for the double-buffered-y fallback path.
    phys_vmem = _vmem_capacity_bytes()
    budget = max(24 * 1024 * 1024, int(phys_vmem * 0.55))
    tm = _pick_tm(M, K, N, x_isize, y_isize, o_isize, budget)

    # Scoped-VMEM limit sized conservatively (assume y double-buffered) + 25% slack,
    # clamped below physical VMEM.
    need = 2 * (tm * K * x_isize + K * N * y_isize + tm * N * o_isize)
    vmem_limit_bytes = int(
        min(max(need + need // 4, 32 * 1024 * 1024), phys_vmem - 4 * 1024 * 1024)
    )

    grid = (B * C, pl.cdiv(M, tm))

    cost = pl.CostEstimate(
        flops=2 * B * C * M * K * N,
        transcendentals=0,
        bytes_accessed=x2.size * x_isize + y2.size * y_isize + B * C * M * N * o_isize,
    )

    def build(y_pipeline_mode):
        y_kwargs = {} if y_pipeline_mode is None else {"pipeline_mode": y_pipeline_mode}
        return pl.pallas_call(
            _bmm_kernel,
            out_shape=jax.ShapeDtypeStruct((B * C, M, N), out_dtype),
            grid_spec=pltpu.PrefetchScalarGridSpec(
                num_scalar_prefetch=0,
                grid=grid,
                in_specs=[
                    # x: one (tm, K) row-panel per grid step, streamed from HBM once.
                    pl.BlockSpec((1, tm, K), lambda bc, i: (bc, i, 0)),
                    # y: full (K, N) panel, VMEM-resident across the inner i loop
                    # (index_map ignores i); single-buffered when supported.
                    pl.BlockSpec((1, K, N), lambda bc, i: (bc, 0, 0), **y_kwargs),
                ],
                out_specs=pl.BlockSpec((1, tm, N), lambda bc, i: (bc, i, 0)),
            ),
            compiler_params=pltpu.CompilerParams(
                dimension_semantics=("parallel", "parallel"),
                vmem_limit_bytes=vmem_limit_bytes,
            ),
            cost_estimate=cost,
        )

    try:
        out = build(pl.Buffered(1))(x2, y2)
    except Exception:
        # Runtime that doesn't honor per-BlockSpec pipeline_mode: default buffering.
        out = build(None)(x2, y2)

    return out.reshape(B, C, M, N)


def init_two_layer_net_params(key, D_in, H, D_out):
    """Deterministic init of the (unused-in-forward) nn.Linear parameters."""
    k1, k2, k3, k4 = jax.random.split(key, 4)
    bound1 = 1.0 / jnp.sqrt(D_in)
    bound2 = 1.0 / jnp.sqrt(H)
    return {
        "linear1_w": jax.random.uniform(k1, (H, D_in), jnp.float32, -bound1, bound1),
        "linear1_b": jax.random.uniform(k2, (H,), jnp.float32, -bound1, bound1),
        "linear2_w": jax.random.uniform(k3, (D_out, H), jnp.float32, -bound2, bound2),
        "linear2_b": jax.random.uniform(k4, (D_out,), jnp.float32, -bound2, bound2),
    }


def two_layer_net_forward(params, x, y, *, use_bf16_mxu=False):
    # forward() ignores the linear layers entirely; it is just matmul(x, y).
    del params
    return batched_matmul(x, y, use_bf16_mxu=use_bf16_mxu)


if __name__ == "__main__":
    key = jax.random.PRNGKey(0)
    kx, ky, kp = jax.random.split(key, 3)

    # Small shapes mirroring the original (1, 4, 7040, 7040) x (1, 4, 7040, 256):
    B, C, M, K, N = 1, 4, 256, 256, 128
    x = jax.random.normal(kx, (B, C, M, K), dtype=jnp.float32)
    y = jax.random.normal(ky, (B, C, K, N), dtype=jnp.float32)

    # Module constructor shapes (D_in, H, D_out) — declared but unused in forward().
    params = init_two_layer_net_params(kp, D_in=K, H=32, D_out=N)

    z_ref = jnp.matmul(x, y)

    # Strict f32 path (default; matches torch.matmul numerics).
    z = jax.block_until_ready(two_layer_net_forward(params, x, y))
    assert z.shape == (B, C, M, N)
    assert jnp.allclose(z, z_ref, atol=1e-4, rtol=1e-4)

    # bf16-MXU fast path (f32 accumulation); looser tolerance from bf16 input rounding.
    z_fast = jax.block_until_ready(batched_matmul(x, y, use_bf16_mxu=True))
    assert z_fast.shape == (B, C, M, N)
    assert jnp.allclose(z_fast, z_ref, atol=1.0, rtol=5e-2)

    print("KERNEL_OK")
</pallas_src>

<mosaic_0001>
module attributes {stable_mosaic.version = 11 : i64} {
  func.func @_bmm_kernel(%arg0: i32, %arg1: i32, %arg2: memref<1x256x256xf32, #tpu.memory_space<vmem>>, %arg3: memref<1x256x128xf32, #tpu.memory_space<vmem>>, %arg4: memref<1x256x128xf32, #tpu.memory_space<vmem>>) attributes {dimension_semantics = [#tpu.dimension_semantics<parallel>, #tpu.dimension_semantics<parallel>], iteration_bounds = array<i64: 4, 1>, scalar_prefetch = 0 : i64, scratch_operands = 0 : i64, tpu.core_type = #tpu.core_type<tc>, window_params = [{transform_indices = @transform_0, window_bounds = array<i64: 1, 256, 256>}, {pipeline_mode = #tpu.pipeline_mode<synchronous>, transform_indices = @transform_1, window_bounds = array<i64: 1, 256, 128>}, {transform_indices = @transform_2, window_bounds = array<i64: 1, 256, 128>}]} {
    %c0 = arith.constant 0 : index
    %c0_0 = arith.constant 0 : index
    %c0_1 = arith.constant 0 : index
    %0 = vector.load %arg2[%c0, %c0_0, %c0_1] : memref<1x256x256xf32, #tpu.memory_space<vmem>>, vector<1x256x256xf32>
    %1 = vector.shape_cast %0 : vector<1x256x256xf32> to vector<256x256xf32>
    %c0_2 = arith.constant 0 : index
    %c0_3 = arith.constant 0 : index
    %c0_4 = arith.constant 0 : index
    %2 = vector.load %arg3[%c0_2, %c0_3, %c0_4] : memref<1x256x128xf32, #tpu.memory_space<vmem>>, vector<1x256x128xf32>
    %3 = vector.shape_cast %2 : vector<1x256x128xf32> to vector<256x128xf32>
    %cst = arith.constant dense<0.000000e+00> : vector<256x128xf32>
    %4 = tpu.matmul %1, %3, %cst {dimension_numbers = #tpu.dot_dimension_numbers<[1], [0], [0], [1], [0, 0, 1, 1], [], []>} : vector<256x256xf32>, vector<256x128xf32>, vector<256x128xf32> -> vector<256x128xf32>
    %c0_5 = arith.constant 0 : index
    %c0_6 = arith.constant 0 : index
    %c0_7 = arith.constant 0 : index
    %5 = vector.load %arg4[%c0_5, %c0_6, %c0_7] : memref<1x256x128xf32, #tpu.memory_space<vmem>>, vector<1x256x128xf32>
    %6 = vector.shape_cast %5 : vector<1x256x128xf32> to vector<256x128xf32>
    %7 = vector.shape_cast %4 : vector<256x128xf32> to vector<1x256x128xf32>
    tpu.vector_store %arg4[%c0_5, %c0_6, %c0_7], %7 {strides = array<i32>} : memref<1x256x128xf32, #tpu.memory_space<vmem>>, vector<1x256x128xf32>,
    return
  }
  func.func @transform_0(%arg0: i32, %arg1: i32) -> (i32, i32, i32) {
    %c0_i32 = arith.constant 0 : i32
    %c0_i32_0 = arith.constant 0 : i32
    return %arg0, %arg1, %c0_i32 : i32, i32, i32
  }
  func.func @transform_1(%arg0: i32, %arg1: i32) -> (i32, i32, i32) {
    %c0_i32 = arith.constant 0 : i32
    %c0_i32_0 = arith.constant 0 : i32
    %c0_i32_1 = arith.constant 0 : i32
    return %arg0, %c0_i32, %c0_i32_0 : i32, i32, i32
  }
  func.func @transform_2(%arg0: i32, %arg1: i32) -> (i32, i32, i32) {
    %c0_i32 = arith.constant 0 : i32
    %c0_i32_0 = arith.constant 0 : i32
    return %arg0, %arg1, %c0_i32 : i32, i32, i32
  }
}

module attributes {stable_mosaic.version = 11 : i64} {
  func.func @_bmm_kernel(%arg0: i32, %arg1: i32, %arg2: memref<1x256x256xf32, #tpu.memory_space<vmem>>, %arg3: memref<1x256x128xf32, #tpu.memory_space<vmem>>, %arg4: memref<1x256x128xf32, #tpu.memory_space<vmem>>) attributes {dimension_semantics = [#tpu.dimension_semantics<parallel>, #tpu.dimension_semantics<parallel>], iteration_bounds = array<i64: 4, 1>, scalar_prefetch = 0 : i64, scratch_operands = 0 : i64, tpu.core_type = #tpu.core_type<tc>, window_params = [{transform_indices = @transform_0, window_bounds = array<i64: 1, 256, 256>}, {transform_indices = @transform_1, window_bounds = array<i64: 1, 256, 128>}, {transform_indices = @transform_2, window_bounds = array<i64: 1, 256, 128>}]} {
    %c0 = arith.constant 0 : index
    %c0_0 = arith.constant 0 : index
    %c0_1 = arith.constant 0 : index
    %0 = vector.load %arg2[%c0, %c0_0, %c0_1] : memref<1x256x256xf32, #tpu.memory_space<vmem>>, vector<1x256x256xf32>
    %1 = vector.shape_cast %0 : vector<1x256x256xf32> to vector<256x256xf32>
    %c0_2 = arith.constant 0 : index
    %c0_3 = arith.constant 0 : index
    %c0_4 = arith.constant 0 : index
    %2 = vector.load %arg3[%c0_2, %c0_3, %c0_4] : memref<1x256x128xf32, #tpu.memory_space<vmem>>, vector<1x256x128xf32>
    %3 = vector.shape_cast %2 : vector<1x256x128xf32> to vector<256x128xf32>
    %cst = arith.constant dense<0.000000e+00> : vector<256x128xf32>
    %4 = tpu.matmul %1, %3, %cst {dimension_numbers = #tpu.dot_dimension_numbers<[1], [0], [0], [1], [0, 0, 1, 1], [], []>} : vector<256x256xf32>, vector<256x128xf32>, vector<256x128xf32> -> vector<256x128xf32>
    %c0_5 = arith.constant 0 : index
    %c0_6 = arith.constant 0 : index
    %c0_7 = arith.constant 0 : index
    %5 = vector.load %arg4[%c0_5, %c0_6, %c0_7] : memref<1x256x128xf32, #tpu.memory_space<vmem>>, vector<1x256x128xf32>
    %6 = vector.shape_cast %5 : vector<1x256x128xf32> to vector<256x128xf32>
    %7 = vector.shape_cast %4 : vector<256x128xf32> to vector<1x256x128xf32>
    tpu.vector_store %arg4[%c0_5, %c0_6, %c0_7], %7 {strides = array<i32>} : memref<1x256x128xf32, #tpu.memory_space<vmem>>, vector<1x256x128xf32>,
    return
  }
  func.func @transform_0(%arg0: i32, %arg1: i32) -> (i32, i32, i32) {
    %c0_i32 = arith.constant 0 : i32
    %c0_i32_0 = arith.constant 0 : i32
    return %arg0, %arg1, %c0_i32 : i32, i32, i32
  }
  func.func @transform_1(%arg0: i32, %arg1: i32) -> (i32, i32, i32) {
    %c0_i32 = arith.constant 0 : i32
    %c0_i32_0 = arith.constant 0 : i32
    %c0_i32_1 = arith.constant 0 : i32
    return %arg0, %c0_i32, %c0_i32_0 : i32, i32, i32
  }
  func.func @transform_2(%arg0: i32, %arg1: i32) -> (i32, i32, i32) {
    %c0_i32 = arith.constant 0 : i32
    %c0_i32_0 = arith.constant 0 : i32
    return %arg0, %arg1, %c0_i32 : i32, i32, i32
  }
}

</mosaic_0001>

<llo_original>
// kernel: tpu_custom_call.1
$region0: #{tpu_custom_call.1}
  #allocation0 [shape = 'u32[]', space=smem, size = 0x4, offset = 0x4, fixed_abs, tag = 'smem constant byte address 0x4 - core index']
  #allocation1 [shape = 'u32[72,128]{1,0:T(1,128)}', space=vmem, size = 0x9000, scoped, tag = 'internal scratch']
  %s0 = inlined_call_operand.hbm [shape: f32[4,256,256], index: 0, kind: input, shape index: {}]
  %s1 = inlined_call_operand.hbm [shape: f32[4,256,128], index: 1, kind: input, shape index: {}]
  %s2 = inlined_call_operand.hbm [shape: f32[4,256,128], index: 2, kind: output, shape index: {}]
  %s3 = sld [smem:[#allocation0]]
  $region49: #{tpu_custom_call.1} parent=0
    _
  %s5 = ssub.s32 1, %s3
  %s6 = scalar_select 0, %s5, %s3
  $region1: #{tpu_custom_call.1} parent=0
    #allocation2 [shape = 'u8[524288]{0}', space=vmem, size = 0x80000, scoped, tag = 'input window, operand 0']
    #allocation3 [shape = 's32[2]{0}', space=sflag, size = 0x8, scoped, tag = 'scoped memory for tpu_custom_call.1']
    #allocation4 [shape = 's32[2]{0}', space=sflag, size = 0x8, scoped, tag = 'scoped memory for tpu_custom_call.1']
    #allocation5 [shape = 'u8[131072]{0}', space=vmem, size = 0x20000, scoped, tag = 'input window, operand 1, single buffered']
    #allocation6 [shape = 's32[1]{0}', space=sflag, size = 0x4, scoped, tag = 'scoped memory for tpu_custom_call.1']
    #allocation7 [shape = 'u8[262144]{0}', space=vmem, size = 0x40000, scoped, tag = 'output window, operand 0']
    %7 = vsyncpa [#allocation3], 0
    %s8 = scalar_lea.sflag [#allocation3], 1
    %9 = vsyncpa %s8, 0
    %10 = vsyncpa [#allocation6], 0
    %11 = vsyncpa [#allocation4], 0
    %s12 = scalar_lea.sflag [#allocation4], 1
    %13 = vsyncpa %s12, 0
    loop: start=0, step=1, limit=6
    $region2: #{tpu_custom_call.1} parent=1 // loop_pre_header
      _
    $region3: #{tpu_custom_call.1} parent=1 // loop_header
      %s15 = sphi 0, %s19
      %p16 = scmp.ge.s32.totalorder %s15, 6
      %s22 = sphi 0, %s34
      %s23 = sphi 0, %s30
      %s24 = sphi 0, %s22
      %s25 = sphi 0, %s23
      %s26 = sphi 0, %s24
      %s27 = sphi 0, %s25
      %s39 = sphi 0, %s41
      %s42 = sphi 0, %s39
      %s43 = sphi 0, %s42
      %s59 = sphi 0, %s43
      %s65 = sphi 0, %s67
      %s68 = sphi 0, %s65
      %s69 = sphi 0, %s68
      %s85 = sphi 0, %s69
      %s93 = sphi 0, %s95
      %s96 = sphi 0, %s93
      %s97 = sphi 0, %s96
      %s113 = sphi 0, %s97
    $region4: #{tpu_custom_call.1} parent=1 // loop_header_branch
      %18 = sbr.rel (%p16) target = $region8
    $region5: #{tpu_custom_call.1} parent=1 // loop_body
      %s20 = ssub.s32 %s15, 1
      %s21 = ssub.s32 %s15, 2
      %s28 = sadd.s32 1, %s23
      %p29 = scmp.ge.s32.totalorder %s28, 1
      %s30 = scalar_select %p29, 0, %s28
      %s31 = sadd.s32 1, %s22
      %s32 = scalar_select %p29, %s31, %s22
      %p33 = scmp.ge.s32.totalorder %s32, 4
      %s34 = scalar_select %p33, 0, %s32
      %s35 = ssub.s32 %s22, %s34
      %s36 = ssub.s32 %s23, %s30
      %s37 = sor.u32 %s35, %s36
      %p38 = scmp.eq.s32.totalorder %s37, 0
      %s40 = sadd.s32 %s39, 1
      %s41 = scalar_select %p38, %s39, %s40
      %p44 = pneg %p38
      %p45 = scmp.eq.s32.totalorder %s15, 3
      %p46 = por %p44, %p45
      %p47 = scmp.ne.s32.totalorder %s39, %s42
      %p48 = scmp.eq.s32.totalorder %s15, 0
      %p49 = por %p47, %p48
      %p50 = scmp.ne.s32.totalorder %s39, %s42
      %p51 = scmp.eq.s32.totalorder %s20, 3
      %p52 = por %p50, %p51
      %p53 = scmp.ne.s32.totalorder %s42, %s43
      %p54 = scmp.eq.s32.totalorder %s20, 0
      %p55 = por %p53, %p54
      %p56 = scmp.ne.s32.totalorder %s42, %s43
      %p57 = scmp.eq.s32.totalorder %s21, 3
      %p58 = por %p56, %p57
      %p60 = scmp.ne.s32.totalorder %s43, %s59
      %p61 = scmp.eq.s32.totalorder %s21, 0
      %p62 = por %p60, %p61
      %s63 = ssub.s32 %s22, %s34
      %p64 = scmp.eq.s32.totalorder %s63, 0
      %s66 = sadd.s32 %s65, 1
      %s67 = scalar_select %p64, %s65, %s66
      %p70 = pneg %p64
      %p71 = scmp.eq.s32.totalorder %s15, 3
      %p72 = por %p70, %p71
      %p73 = scmp.ne.s32.totalorder %s65, %s68
      %p74 = scmp.eq.s32.totalorder %s15, 0
      %p75 = por %p73, %p74
      %p76 = scmp.ne.s32.totalorder %s65, %s68
      %p77 = scmp.eq.s32.totalorder %s20, 3
      %p78 = por %p76, %p77
      %p79 = scmp.ne.s32.totalorder %s68, %s69
      %p80 = scmp.eq.s32.totalorder %s20, 0
      %p81 = por %p79, %p80
      %p82 = scmp.ne.s32.totalorder %s68, %s69
      %p83 = scmp.eq.s32.totalorder %s21, 3
      %p84 = por %p82, %p83
      %p86 = scmp.ne.s32.totalorder %s69, %s85
      %p87 = scmp.eq.s32.totalorder %s21, 0
      %p88 = por %p86, %p87
      %s89 = ssub.s32 %s22, %s34
      %s90 = ssub.s32 %s23, %s30
      %s91 = sor.u32 %s89, %s90
      %p92 = scmp.eq.s32.totalorder %s91, 0
      %s94 = sadd.s32 %s93, 1
      %s95 = scalar_select %p92, %s93, %s94
      %p98 = pneg %p92
      %p99 = scmp.eq.s32.totalorder %s15, 3
      %p100 = por %p98, %p99
      %p101 = scmp.ne.s32.totalorder %s93, %s96
      %p102 = scmp.eq.s32.totalorder %s15, 0
      %p103 = por %p101, %p102
      %p104 = scmp.ne.s32.totalorder %s93, %s96
      %p105 = scmp.eq.s32.totalorder %s20, 3
      %p106 = por %p104, %p105
      %p107 = scmp.ne.s32.totalorder %s96, %s97
      %p108 = scmp.eq.s32.totalorder %s20, 0
      %p109 = por %p107, %p108
      %p110 = scmp.ne.s32.totalorder %s96, %s97
      %p111 = scmp.eq.s32.totalorder %s21, 3
      %p112 = por %p110, %p111
      %p114 = scmp.ne.s32.totalorder %s97, %s113
      %p115 = scmp.eq.s32.totalorder %s21, 0
      %p116 = por %p114, %p115
      %p117 = scmp.le.s32.totalorder 1, %s15
      %p118 = scmp.lt.s32.totalorder %s15, 5
      %p119 = pnand %p117, %p118
      %p120 = pneg %p119
      // Predicated region
      $region9: #{tpu_custom_call.1} parent=5 // pred_check
        _
      $region10: #{tpu_custom_call.1} parent=5 // pred_check_branch
        %122 = sbr.rel (%p119) target = $region12
      $region11: #{tpu_custom_call.1} parent=5 // pred_region
        %s123 = ssub.s32 %s15, 1
        // Predicated region
        $region13: #{tpu_custom_call.1} parent=11 // pred_check
          %p124 = pneg %p81
        $region14: #{tpu_custom_call.1} parent=11 // pred_check_branch
          %126 = sbr.rel (%p124) target = $region16
        $region15: #{tpu_custom_call.1} parent=11 // pred_region
          %128 = vsyncadd [#allocation6], 0
          %s129 = smul.addr %s24, 32
          %s130 = smul.addr %s129, 8
          %s131 = scalar_lea.hbm %s1, %s130
          %s132 = sshll.u32 %s131, 4
          %s133 = int_to_ptr.hbm [resolvable:$true] %s132
          %s134 = sshll.u32 [#allocation5], 4
          %s135 = int_to_ptr.vmem [resolvable:$true] %s134
          %140 = dma.hbm_to_vmem [thread:$0]  %s133, 4096, %s135, [#allocation6], 128, 128, 8
        $region16: #{tpu_custom_call.1} parent=11 // pred_fallthru
          _
      $region12: #{tpu_custom_call.1} parent=5 // pred_fallthru
        _
      %p141 = scmp.lt.s32.totalorder %s15, 4
      // Predicated region
      $region17: #{tpu_custom_call.1} parent=5 // pred_check
        %p142 = pneg %p141
      $region18: #{tpu_custom_call.1} parent=5 // pred_check_branch
        %144 = sbr.rel (%p142) target = $region20
      $region19: #{tpu_custom_call.1} parent=5 // pred_region
        // Predicated region
        $region21: #{tpu_custom_call.1} parent=19 // pred_check
          %p145 = pneg %p49
        $region22: #{tpu_custom_call.1} parent=19 // pred_check_branch
          %147 = sbr.rel (%p145) target = $region24
        $region23: #{tpu_custom_call.1} parent=19 // pred_region
          %s148 = sand.u32 %s39, 1
          %s149 = scalar_lea.sflag [#allocation3], %s148
          %s150 = sand.u32 %s39, 1
          %s151 = smul.addr %s150, 512
          %s152 = scalar_lea.vmem [#allocation2], %s151
          %s153 = smul.u32 32, %s23
          %155 = vsyncadd %s149, 0
          %s156 = smul.addr %s153, 2
          %s157 = smul.addr %s22, 64
          %s158 = sadd.s32 %s156, %s157
          %s159 = smul.addr %s158, 8
          %s160 = scalar_lea.hbm %s0, %s159
          %s161 = sshll.u32 %s160, 4
          %s162 = int_to_ptr.hbm [resolvable:$true] %s161
          %s163 = sshll.u32 %s152, 4
          %s164 = int_to_ptr.vmem [resolvable:$true] %s163
          %169 = dma.hbm_to_vmem [thread:$0]  %s162, 8192, %s164, %s149, 256, 256, 16
        $region24: #{tpu_custom_call.1} parent=19 // pred_fallthru
          _
      $region20: #{tpu_custom_call.1} parent=5 // pred_fallthru
        _
      %p170 = scmp.le.s32.totalorder 1, %s15
      %p171 = scmp.lt.s32.totalorder %s15, 5
      %p172 = pnand %p170, %p171
      %p173 = pneg %p172
      // Predicated region
      $region25: #{tpu_custom_call.1} parent=5 // pred_check
        _
      $region26: #{tpu_custom_call.1} parent=5 // pred_check_branch
        %175 = sbr.rel (%p172) target = $region28
      $region27: #{tpu_custom_call.1} parent=5 // pred_region
        %s176 = ssub.s32 %s15, 1
        %s177 = sand.u32 %s42, 1
        %s178 = scalar_lea.sflag [#allocation3], %s177
        %s179 = sand.u32 %s42, 1
        %s180 = smul.addr %s179, 512
        %s181 = scalar_lea.vmem [#allocation2], %s180
        // Predicated region
        $region29: #{tpu_custom_call.1} parent=27 // pred_check
          %p182 = pneg %p55
        $region30: #{tpu_custom_call.1} parent=27 // pred_check_branch
          %184 = sbr.rel (%p182) target = $region32
        $region31: #{tpu_custom_call.1} parent=27 // pred_region
          %186 = dma.done %s178, 8192
        $region32: #{tpu_custom_call.1} parent=27 // pred_fallthru
          _
        // Predicated region
        $region33: #{tpu_custom_call.1} parent=27 // pred_check
          %p187 = pneg %p81
        $region34: #{tpu_custom_call.1} parent=27 // pred_check_branch
          %189 = sbr.rel (%p187) target = $region36
        $region35: #{tpu_custom_call.1} parent=27 // pred_region
          %191 = dma.done [#allocation6], 4096
        $region36: #{tpu_custom_call.1} parent=27 // pred_fallthru
          _
        %s192 = sand.u32 %s42, 1
        %s193 = scalar_lea.sflag [#allocation3], %s192
        %s194 = sand.u32 %s42, 1
        %s195 = smul.addr %s194, 512
        %s196 = scalar_lea.vmem [#allocation2], %s195
        %p197 = pneg %p55
        %p198 = pneg %p52
        %p199 = pneg %p81
        %p200 = pneg %p78
        %p201 = pneg %p109
        %p202 = pneg %p106
        %s203 = sand.u32 %s96, 1
        %s204 = scalar_lea.sflag [#allocation4], %s203
        %s205 = sand.u32 %s96, 1
        %s206 = smul.addr %s205, 256
        %s207 = scalar_lea.vmem [#allocation7], %s206
        %s208 = smul.u32 32, %s25
        %s209 = smul.u32 32, %s25
        %v210 = vld [vmem:[%s181] sm:$0xff]
        %v211 = vld [vmem:[%s181 + $0x8] sm:$0xff]
        %v212 = vld [vmem:[%s181 + $0x10] sm:$0xff]
        %v213 = vld [vmem:[%s181 + $0x18] sm:$0xff]
        %v214 = vld [vmem:[%s181 + $0x20] sm:$0xff]
        %v215 = vld [vmem:[%s181 + $0x28] sm:$0xff]
        %v216 = vld [vmem:[%s181 + $0x30] sm:$0xff]
        %v217 = vld [vmem:[%s181 + $0x38] sm:$0xff]
        %v218 = vld [vmem:[%s181 + $0x40] sm:$0xff]
        %v219 = vld [vmem:[%s181 + $0x48] sm:$0xff]
        %v220 = vld [vmem:[%s181 + $0x50] sm:$0xff]
        %v221 = vld [vmem:[%s181 + $0x58] sm:$0xff]
        %v222 = vld [vmem:[%s181 + $0x60] sm:$0xff]
        %v223 = vld [vmem:[%s181 + $0x68] sm:$0xff]
        %v224 = vld [vmem:[%s181 + $0x70] sm:$0xff]
        %v225 = vld [vmem:[%s181 + $0x78] sm:$0xff]
        %v226 = vld [vmem:[%s181 + $0x80] sm:$0xff]
        %v227 = vld [vmem:[%s181 + $0x88] sm:$0xff]
        %v228 = vld [vmem:[%s181 + $0x90] sm:$0xff]
        %v229 = vld [vmem:[%s181 + $0x98] sm:$0xff]
        %v230 = vld [vmem:[%s181 + $0xa0] sm:$0xff]
        %v231 = vld [vmem:[%s181 + $0xa8] sm:$0xff]
        %v232 = vld [vmem:[%s181 + $0xb0] sm:$0xff]
        %v233 = vld [vmem:[%s181 + $0xb8] sm:$0xff]
        %v234 = vld [vmem:[%s181 + $0xc0] sm:$0xff]
        %v235 = vld [vmem:[%s181 + $0xc8] sm:$0xff]
        %v236 = vld [vmem:[%s181 + $0xd0] sm:$0xff]
        %v237 = vld [vmem:[%s181 + $0xd8] sm:$0xff]
        %v238 = vld [vmem:[%s181 + $0xe0] sm:$0xff]
        %v239 = vld [vmem:[%s181 + $0xe8] sm:$0xff]
        %v240 = vld [vmem:[%s181 + $0xf0] sm:$0xff]
        %v241 = vld [vmem:[%s181 + $0xf8] sm:$0xff]
        %v242 = vld [vmem:[%s181 + $0x100] sm:$0xff]
        %v243 = vld [vmem:[%s181 + $0x108] sm:$0xff]
        %v244 = vld [vmem:[%s181 + $0x110] sm:$0xff]
        %v245 = vld [vmem:[%s181 + $0x118] sm:$0xff]
        %v246 = vld [vmem:[%s181 + $0x120] sm:$0xff]
        %v247 = vld [vmem:[%s181 + $0x128] sm:$0xff]
        %v248 = vld [vmem:[%s181 + $0x130] sm:$0xff]
        %v249 = vld [vmem:[%s181 + $0x138] sm:$0xff]
        %v250 = vld [vmem:[%s181 + $0x140] sm:$0xff]
        %v251 = vld [vmem:[%s181 + $0x148] sm:$0xff]
        %v252 = vld [vmem:[%s181 + $0x150] sm:$0xff]
        %v253 = vld [vmem:[%s181 + $0x158] sm:$0xff]
        %v254 = vld [vmem:[%s181 + $0x160] sm:$0xff]
        %v255 = vld [vmem:[%s181 + $0x168] sm:$0xff]
        %v256 = vld [vmem:[%s181 + $0x170] sm:$0xff]
        %v257 = vld [vmem:[%s181 + $0x178] sm:$0xff]
        %v258 = vld [vmem:[%s181 + $0x180] sm:$0xff]
        %v259 = vld [vmem:[%s181 + $0x188] sm:$0xff]
        %v260 = vld [vmem:[%s181 + $0x190] sm:$0xff]
        %v261 = vld [vmem:[%s181 + $0x198] sm:$0xff]
        %v262 = vld [vmem:[%s181 + $0x1a0] sm:$0xff]
        %v263 = vld [vmem:[%s181 + $0x1a8] sm:$0xff]
        %v264 = vld [vmem:[%s181 + $0x1b0] sm:$0xff]
        %v265 = vld [vmem:[%s181 + $0x1b8] sm:$0xff]
        %v266 = vld [vmem:[%s181 + $0x1c0] sm:$0xff]
        %v267 = vld [vmem:[%s181 + $0x1c8] sm:$0xff]
        %v268 = vld [vmem:[%s181 + $0x1d0] sm:$0xff]
        %v269 = vld [vmem:[%s181 + $0x1d8] sm:$0xff]
        %v270 = vld [vmem:[%s181 + $0x1e0] sm:$0xff]
        %v271 = vld [vmem:[%s181 + $0x1e8] sm:$0xff]
        %v272 = vld [vmem:[%s181 + $0x1f0] sm:$0xff]
        %v273 = vld [vmem:[%s181 + $0x1f8] sm:$0xff]
        %v274 = vld [vmem:[#allocation5] sm:$0xff]
        %v275 = vld [vmem:[#allocation5 + $0x8] sm:$0xff]
        %v276 = vld [vmem:[#allocation5 + $0x10] sm:$0xff]
        %v277 = vld [vmem:[#allocation5 + $0x18] sm:$0xff]
        %v278 = vld [vmem:[#allocation5 + $0x20] sm:$0xff]
        %v279 = vld [vmem:[#allocation5 + $0x28] sm:$0xff]
        %v280 = vld [vmem:[#allocation5 + $0x30] sm:$0xff]
        %v281 = vld [vmem:[#allocation5 + $0x38] sm:$0xff]
        %v282 = vld [vmem:[#allocation5 + $0x40] sm:$0xff]
        %v283 = vld [vmem:[#allocation5 + $0x48] sm:$0xff]
        %v284 = vld [vmem:[#allocation5 + $0x50] sm:$0xff]
        %v285 = vld [vmem:[#allocation5 + $0x58] sm:$0xff]
        %v286 = vld [vmem:[#allocation5 + $0x60] sm:$0xff]
        %v287 = vld [vmem:[#allocation5 + $0x68] sm:$0xff]
        %v288 = vld [vmem:[#allocation5 + $0x70] sm:$0xff]
        %v289 = vld [vmem:[#allocation5 + $0x78] sm:$0xff]
        %v290 = vld [vmem:[#allocation5 + $0x80] sm:$0xff]
        %v291 = vld [vmem:[#allocation5 + $0x88] sm:$0xff]
        %v292 = vld [vmem:[#allocation5 + $0x90] sm:$0xff]
        %v293 = vld [vmem:[#allocation5 + $0x98] sm:$0xff]
        %v294 = vld [vmem:[#allocation5 + $0xa0] sm:$0xff]
        %v295 = vld [vmem:[#allocation5 + $0xa8] sm:$0xff]
        %v296 = vld [vmem:[#allocation5 + $0xb0] sm:$0xff]
        %v297 = vld [vmem:[#allocation5 + $0xb8] sm:$0xff]
        %v298 = vld [vmem:[#allocation5 + $0xc0] sm:$0xff]
        %v299 = vld [vmem:[#allocation5 + $0xc8] sm:$0xff]
        %v300 = vld [vmem:[#allocation5 + $0xd0] sm:$0xff]
        %v301 = vld [vmem:[#allocation5 + $0xd8] sm:$0xff]
        %v302 = vld [vmem:[#allocation5 + $0xe0] sm:$0xff]
        %v303 = vld [vmem:[#allocation5 + $0xe8] sm:$0xff]
        %v304 = vld [vmem:[#allocation5 + $0xf0] sm:$0xff]
        %v305 = vld [vmem:[#allocation5 + $0xf8] sm:$0xff]
        %306 = vmatpush.msra.mxu0 %v289
        %307 = vmatpush.msra.mxu0 %v288
        %308 = vmatpush.msra.mxu0 %v287
        %309 = vmatpush.msra.mxu0 %v286
        %310 = vmatpush.msra.mxu0 %v285
        %311 = vmatpush.msra.mxu0 %v284
        %312 = vmatpush.msra.mxu0 %v283
        %313 = vmatpush.msra.mxu0 %v282
        %314 = vmatpush.msra.mxu0 %v281
        %315 = vmatpush.msra.mxu0 %v280
        %316 = vmatpush.msra.mxu0 %v279
        %317 = vmatpush.msra.mxu0 %v278
        %318 = vmatpush.msra.mxu0 %v277
        %319 = vmatpush.msra.mxu0 %v276
        %320 = vmatpush.msra.mxu0 %v275
        %321 = vmatpush.msra.mxu0 %v274
        %322 = vmatmul.f32.gmra.mxu0 %v210
        %v323 = vpop.f32.mrf.mxu0
        %v324 = vadd.f32 0.0, %v323
        %325 = vmatmul.f32.gmra.mxu0 %v212
        %v326 = vpop.f32.mrf.mxu0
        %v327 = vadd.f32 0.0, %v326
        %328 = vmatmul.f32.gmra.mxu0 %v214
        %v329 = vpop.f32.mrf.mxu0
        %v330 = vadd.f32 0.0, %v329
        %331 = vmatmul.f32.gmra.mxu0 %v216
        %v332 = vpop.f32.mrf.mxu0
        %v333 = vadd.f32 0.0, %v332
        %334 = vmatmul.f32.gmra.mxu0 %v218
        %v335 = vpop.f32.mrf.mxu0
        %v336 = vadd.f32 0.0, %v335
        %337 = vmatmul.f32.gmra.mxu0 %v220
        %v338 = vpop.f32.mrf.mxu0
        %v339 = vadd.f32 0.0, %v338
        %340 = vmatmul.f32.gmra.mxu0 %v222
        %v341 = vpop.f32.mrf.mxu0
        %v342 = vadd.f32 0.0, %v341
        %343 = vmatmul.f32.gmra.mxu0 %v224
        %v344 = vpop.f32.mrf.mxu0
        %v345 = vadd.f32 0.0, %v344
        %346 = vmatmul.f32.gmra.mxu0 %v226
        %v347 = vpop.f32.mrf.mxu0
        %v348 = vadd.f32 0.0, %v347
        %349 = vmatmul.f32.gmra.mxu0 %v228
        %v350 = vpop.f32.mrf.mxu0
        %v351 = vadd.f32 0.0, %v350
        %352 = vmatmul.f32.gmra.mxu0 %v230
        %v353 = vpop.f32.mrf.mxu0
        %v354 = vadd.f32 0.0, %v353
        %355 = vmatmul.f32.gmra.mxu0 %v232
        %v356 = vpop.f32.mrf.mxu0
        %v357 = vadd.f32 0.0, %v356
        %358 = vmatmul.f32.gmra.mxu0 %v234
        %v359 = vpop.f32.mrf.mxu0
        %v360 = vadd.f32 0.0, %v359
        %361 = vmatmul.f32.gmra.mxu0 %v236
        %v362 = vpop.f32.mrf.mxu0
        %v363 = vadd.f32 0.0, %v362
        %364 = vmatmul.f32.gmra.mxu0 %v238
        %v365 = vpop.f32.mrf.mxu0
        %v366 = vadd.f32 0.0, %v365
        %367 = vmatmul.f32.gmra.mxu0 %v240
        %v368 = vpop.f32.mrf.mxu0
        %v369 = vadd.f32 0.0, %v368
        %370 = vmatmul.f32.gmra.mxu0 %v242
        %v371 = vpop.f32.mrf.mxu0
        %v372 = vadd.f32 0.0, %v371
        %373 = vmatmul.f32.gmra.mxu0 %v244
        %v374 = vpop.f32.mrf.mxu0
        %v375 = vadd.f32 0.0, %v374
        %376 = vmatmul.f32.gmra.mxu0 %v246
        %v377 = vpop.f32.mrf.mxu0
        %v378 = vadd.f32 0.0, %v377
        %379 = vmatmul.f32.gmra.mxu0 %v248
        %v380 = vpop.f32.mrf.mxu0
        %v381 = vadd.f32 0.0, %v380
        %382 = vmatmul.f32.gmra.mxu0 %v250
        %v383 = vpop.f32.mrf.mxu0
        %v384 = vadd.f32 0.0, %v383
        %385 = vmatmul.f32.gmra.mxu0 %v252
        %v386 = vpop.f32.mrf.mxu0
        %v387 = vadd.f32 0.0, %v386
        %388 = vmatmul.f32.gmra.mxu0 %v254
        %v389 = vpop.f32.mrf.mxu0
        %v390 = vadd.f32 0.0, %v389
        %391 = vmatmul.f32.gmra.mxu0 %v256
        %v392 = vpop.f32.mrf.mxu0
        %v393 = vadd.f32 0.0, %v392
        %394 = vmatmul.f32.gmra.mxu0 %v258
        %v395 = vpop.f32.mrf.mxu0
        %v396 = vadd.f32 0.0, %v395
        %397 = vmatmul.f32.gmra.mxu0 %v260
        %v398 = vpop.f32.mrf.mxu0
        %v399 = vadd.f32 0.0, %v398
        %400 = vmatmul.f32.gmra.mxu0 %v262
        %v401 = vpop.f32.mrf.mxu0
        %v402 = vadd.f32 0.0, %v401
        %403 = vmatmul.f32.gmra.mxu0 %v264
        %v404 = vpop.f32.mrf.mxu0
        %v405 = vadd.f32 0.0, %v404
        %406 = vmatmul.f32.gmra.mxu0 %v266
        %v407 = vpop.f32.mrf.mxu0
        %v408 = vadd.f32 0.0, %v407
        %409 = vmatmul.f32.gmra.mxu0 %v268
        %v410 = vpop.f32.mrf.mxu0
        %v411 = vadd.f32 0.0, %v410
        %412 = vmatmul.f32.gmra.mxu0 %v270
        %v413 = vpop.f32.mrf.mxu0
        %v414 = vadd.f32 0.0, %v413
        %415 = vmatmul.f32.gmra.mxu0 %v272
        %v416 = vpop.f32.mrf.mxu0
        %v417 = vadd.f32 0.0, %v416
        %418 = vdwg.mxu0
        %419 = vmatpush.msra.mxu0 %v305
        %420 = vmatpush.msra.mxu0 %v304
        %421 = vmatpush.msra.mxu0 %v303
        %422 = vmatpush.msra.mxu0 %v302
        %423 = vmatpush.msra.mxu0 %v301
        %424 = vmatpush.msra.mxu0 %v300
        %425 = vmatpush.msra.mxu0 %v299
        %426 = vmatpush.msra.mxu0 %v298
        %427 = vmatpush.msra.mxu0 %v297
        %428 = vmatpush.msra.mxu0 %v296
        %429 = vmatpush.msra.mxu0 %v295
        %430 = vmatpush.msra.mxu0 %v294
        %431 = vmatpush.msra.mxu0 %v293
        %432 = vmatpush.msra.mxu0 %v292
        %433 = vmatpush.msra.mxu0 %v291
        %434 = vmatpush.msra.mxu0 %v290
        %435 = vmatmul.f32.gmra.mxu0 %v211
        %v436 = vpop.f32.mrf.mxu0
        %v437 = vadd.f32 %v324, %v436
        %438 = vmatmul.f32.gmra.mxu0 %v213
        %v439 = vpop.f32.mrf.mxu0
        %v440 = vadd.f32 %v327, %v439
        %441 = vmatmul.f32.gmra.mxu0 %v215
        %v442 = vpop.f32.mrf.mxu0
        %v443 = vadd.f32 %v330, %v442
        %444 = vmatmul.f32.gmra.mxu0 %v217
        %v445 = vpop.f32.mrf.mxu0
        %v446 = vadd.f32 %v333, %v445
        %447 = vmatmul.f32.gmra.mxu0 %v219
        %v448 = vpop.f32.mrf.mxu0
        %v449 = vadd.f32 %v336, %v448
        %450 = vmatmul.f32.gmra.mxu0 %v221
        %v451 = vpop.f32.mrf.mxu0
        %v452 = vadd.f32 %v339, %v451
        %453 = vmatmul.f32.gmra.mxu0 %v223
        %v454 = vpop.f32.mrf.mxu0
        %v455 = vadd.f32 %v342, %v454
        %456 = vmatmul.f32.gmra.mxu0 %v225
        %v457 = vpop.f32.mrf.mxu0
        %v458 = vadd.f32 %v345, %v457
        %459 = vmatmul.f32.gmra.mxu0 %v227
        %v460 = vpop.f32.mrf.mxu0
        %v461 = vadd.f32 %v348, %v460
        %462 = vmatmul.f32.gmra.mxu0 %v229
        %v463 = vpop.f32.mrf.mxu0
        %v464 = vadd.f32 %v351, %v463
        %465 = vmatmul.f32.gmra.mxu0 %v231
        %v466 = vpop.f32.mrf.mxu0
        %v467 = vadd.f32 %v354, %v466
        %468 = vmatmul.f32.gmra.mxu0 %v233
        %v469 = vpop.f32.mrf.mxu0
        %v470 = vadd.f32 %v357, %v469
        %471 = vmatmul.f32.gmra.mxu0 %v235
        %v472 = vpop.f32.mrf.mxu0
        %v473 = vadd.f32 %v360, %v472
        %474 = vmatmul.f32.gmra.mxu0 %v237
        %v475 = vpop.f32.mrf.mxu0
        %v476 = vadd.f32 %v363, %v475
        %477 = vmatmul.f32.gmra.mxu0 %v239
        %v478 = vpop.f32.mrf.mxu0
        %v479 = vadd.f32 %v366, %v478
        %480 = vmatmul.f32.gmra.mxu0 %v241
        %v481 = vpop.f32.mrf.mxu0
        %v482 = vadd.f32 %v369, %v481
        %483 = vmatmul.f32.gmra.mxu0 %v243
        %v484 = vpop.f32.mrf.mxu0
        %v485 = vadd.f32 %v372, %v484
        %486 = vmatmul.f32.gmra.mxu0 %v245
        %v487 = vpop.f32.mrf.mxu0
        %v488 = vadd.f32 %v375, %v487
        %489 = vmatmul.f32.gmra.mxu0 %v247
        %v490 = vpop.f32.mrf.mxu0
        %v491 = vadd.f32 %v378, %v490
        %492 = vmatmul.f32.gmra.mxu0 %v249
        %v493 = vpop.f32.mrf.mxu0
        %v494 = vadd.f32 %v381, %v493
        %495 = vmatmul.f32.gmra.mxu0 %v251
        %v496 = vpop.f32.mrf.mxu0
        %v497 = vadd.f32 %v384, %v496
        %498 = vmatmul.f32.gmra.mxu0 %v253
        %v499 = vpop.f32.mrf.mxu0
        %v500 = vadd.f32 %v387, %v499
        %501 = vmatmul.f32.gmra.mxu0 %v255
        %v502 = vpop.f32.mrf.mxu0
        %v503 = vadd.f32 %v390, %v502
        %504 = vmatmul.f32.gmra.mxu0 %v257
        %v505 = vpop.f32.mrf.mxu0
        %v506 = vadd.f32 %v393, %v505
        %507 = vmatmul.f32.gmra.mxu0 %v259
        %v508 = vpop.f32.mrf.mxu0
        %v509 = vadd.f32 %v396, %v508
        %510 = vmatmul.f32.gmra.mxu0 %v261
        %v511 = vpop.f32.mrf.mxu0
        %v512 = vadd.f32 %v399, %v511
        %513 = vmatmul.f32.gmra.mxu0 %v263
        %v514 = vpop.f32.mrf.mxu0
        %v515 = vadd.f32 %v402, %v514
        %516 = vmatmul.f32.gmra.mxu0 %v265
        %v517 = vpop.f32.mrf.mxu0
        %v518 = vadd.f32 %v405, %v517
        %519 = vmatmul.f32.gmra.mxu0 %v267
        %v520 = vpop.f32.mrf.mxu0
        %v521 = vadd.f32 %v408, %v520
        %522 = vmatmul.f32.gmra.mxu0 %v269
        %v523 = vpop.f32.mrf.mxu0
        %v524 = vadd.f32 %v411, %v523
        %525 = vmatmul.f32.gmra.mxu0 %v271
        %v526 = vpop.f32.mrf.mxu0
        %v527 = vadd.f32 %v414, %v526
        %528 = vmatmul.f32.gmra.mxu0 %v273
        %v529 = vpop.f32.mrf.mxu0
        %v530 = vadd.f32 %v417, %v529
        %531 = vdwg.mxu0
        %532 = vst [vmem:[%s207] sm:$0xff] %v437
        %533 = vst [vmem:[%s207 + $0x8] sm:$0xff] %v440
        %534 = vst [vmem:[%s207 + $0x10] sm:$0xff] %v443
        %535 = vst [vmem:[%s207 + $0x18] sm:$0xff] %v446
        %536 = vst [vmem:[%s207 + $0x20] sm:$0xff] %v449
        %537 = vst [vmem:[%s207 + $0x28] sm:$0xff] %v452
        %538 = vst [vmem:[%s207 + $0x30] sm:$0xff] %v455
        %539 = vst [vmem:[%s207 + $0x38] sm:$0xff] %v458
        %540 = vst [vmem:[%s207 + $0x40] sm:$0xff] %v461
        %541 = vst [vmem:[%s207 + $0x48] sm:$0xff] %v464
        %542 = vst [vmem:[%s207 + $0x50] sm:$0xff] %v467
        %543 = vst [vmem:[%s207 + $0x58] sm:$0xff] %v470
        %544 = vst [vmem:[%s207 + $0x60] sm:$0xff] %v473
        %545 = vst [vmem:[%s207 + $0x68] sm:$0xff] %v476
        %546 = vst [vmem:[%s207 + $0x70] sm:$0xff] %v479
        %547 = vst [vmem:[%s207 + $0x78] sm:$0xff] %v482
        %548 = vst [vmem:[%s207 + $0x80] sm:$0xff] %v485
        %549 = vst [vmem:[%s207 + $0x88] sm:$0xff] %v488
        %550 = vst [vmem:[%s207 + $0x90] sm:$0xff] %v491
        %551 = vst [vmem:[%s207 + $0x98] sm:$0xff] %v494
        %552 = vst [vmem:[%s207 + $0xa0] sm:$0xff] %v497
        %553 = vst [vmem:[%s207 + $0xa8] sm:$0xff] %v500
        %554 = vst [vmem:[%s207 + $0xb0] sm:$0xff] %v503
        %555 = vst [vmem:[%s207 + $0xb8] sm:$0xff] %v506
        %556 = vst [vmem:[%s207 + $0xc0] sm:$0xff] %v509
        %557 = vst [vmem:[%s207 + $0xc8] sm:$0xff] %v512
        %558 = vst [vmem:[%s207 + $0xd0] sm:$0xff] %v515
        %559 = vst [vmem:[%s207 + $0xd8] sm:$0xff] %v518
        %560 = vst [vmem:[%s207 + $0xe0] sm:$0xff] %v521
        %561 = vst [vmem:[%s207 + $0xe8] sm:$0xff] %v524
        %562 = vst [vmem:[%s207 + $0xf0] sm:$0xff] %v527
        %563 = vst [vmem:[%s207 + $0xf8] sm:$0xff] %v530
        %s564 = sand.u32 %s96, 1
        %s565 = scalar_lea.sflag [#allocation4], %s564
        %s566 = sand.u32 %s96, 1
        %s567 = smul.addr %s566, 256
        %s568 = scalar_lea.vmem [#allocation7], %s567
        // Predicated region
        $region37: #{tpu_custom_call.1} parent=27 // pred_check
          %p569 = pneg %p106
        $region38: #{tpu_custom_call.1} parent=27 // pred_check_branch
          %571 = sbr.rel (%p569) target = $region40
        $region39: #{tpu_custom_call.1} parent=27 // pred_region
          %s572 = smul.u32 32, %s25
          %574 = vsyncadd %s565, 0
          %s575 = smul.addr %s24, 32
          %s576 = sadd.s32 %s572, %s575
          %s577 = smul.addr %s576, 8
          %s578 = scalar_lea.hbm %s2, %s577
          %s579 = sshll.u32 %s568, 4
          %s580 = int_to_ptr.vmem [resolvable:$true] %s579
          %s581 = sshll.u32 %s578, 4
          %s582 = int_to_ptr.hbm [resolvable:$true] %s581
          %587 = dma.vmem_to_hbm [thread:$0]  %s580, 4096, %s582, %s565, 128, 128, 8
        $region40: #{tpu_custom_call.1} parent=27 // pred_fallthru
          _
      $region28: #{tpu_custom_call.1} parent=5 // pred_fallthru
        _
      %p588 = scmp.le.s32.totalorder 2, %s15
      // Predicated region
      $region41: #{tpu_custom_call.1} parent=5 // pred_check
        %p589 = pneg %p588
      $region42: #{tpu_custom_call.1} parent=5 // pred_check_branch
        %591 = sbr.rel (%p589) target = $region44
      $region43: #{tpu_custom_call.1} parent=5 // pred_region
        %s592 = ssub.s32 %s15, 2
        // Predicated region
        $region45: #{tpu_custom_call.1} parent=43 // pred_check
          %p593 = pneg %p112
        $region46: #{tpu_custom_call.1} parent=43 // pred_check_branch
          %595 = sbr.rel (%p593) target = $region48
        $region47: #{tpu_custom_call.1} parent=43 // pred_region
          %s596 = sand.u32 %s97, 1
          %s597 = scalar_lea.sflag [#allocation4], %s596
          %s598 = sand.u32 %s97, 1
          %s599 = smul.addr %s598, 256
          %s600 = scalar_lea.vmem [#allocation7], %s599
          %602 = dma.done %s597, 4096
        $region48: #{tpu_custom_call.1} parent=43 // pred_fallthru
          _
      $region44: #{tpu_custom_call.1} parent=5 // pred_fallthru
        _
    $region6: #{tpu_custom_call.1} parent=1 // loop_footer
      %s19 = sadd.s32 1, %s15
    $region7: #{tpu_custom_call.1} parent=1 // loop_footer_branch
      %14 = sbr.rel target = $region3
    $region8: #{tpu_custom_call.1} parent=1 // loop_exit
      _
    %603 = vsyncpa [#allocation3], 1
    %s604 = scalar_lea.sflag [#allocation3], 1
    %605 = vsyncpa %s604, 1
    %606 = vsyncpa [#allocation6], 1
    %607 = vsyncpa [#allocation4], 1
    %s608 = scalar_lea.sflag [#allocation4], 1
    %609 = vsyncpa %s608, 1

// kernel: tpu_custom_call.1
$region0: #{tpu_custom_call.1}
  #allocation0 [shape = 'u32[]', space=smem, size = 0x4, offset = 0x4, fixed_abs, tag = 'smem constant byte address 0x4 - core index']
  #allocation1 [shape = 'u32[72,128]{1,0:T(1,128)}', space=vmem, size = 0x9000, scoped, tag = 'internal scratch']
  %s0 = inlined_call_operand.hbm [shape: f32[4,256,256], index: 0, kind: input, shape index: {}]
  %s1 = inlined_call_operand.hbm [shape: f32[4,256,128], index: 1, kind: input, shape index: {}]
  %s2 = inlined_call_operand.hbm [shape: f32[4,256,128], index: 2, kind: output, shape index: {}]
  %s3 = sld [smem:[#allocation0]]
  $region49: #{tpu_custom_call.1} parent=0
    _
  %s5 = ssub.s32 1, %s3
  %s6 = scalar_select 0, %s5, %s3
  $region1: #{tpu_custom_call.1} parent=0
    #allocation2 [shape = 'u8[524288]{0}', space=vmem, size = 0x80000, scoped, tag = 'input window, operand 0']
    #allocation3 [shape = 's32[2]{0}', space=sflag, size = 0x8, scoped, tag = 'scoped memory for tpu_custom_call.1']
    #allocation4 [shape = 's32[2]{0}', space=sflag, size = 0x8, scoped, tag = 'scoped memory for tpu_custom_call.1']
    #allocation5 [shape = 'u8[262144]{0}', space=vmem, size = 0x40000, scoped, tag = 'input window, operand 1']
    #allocation6 [shape = 's32[2]{0}', space=sflag, size = 0x8, scoped, tag = 'scoped memory for tpu_custom_call.1']
    #allocation7 [shape = 'u8[262144]{0}', space=vmem, size = 0x40000, scoped, tag = 'output window, operand 0']
    %7 = vsyncpa [#allocation3], 0
    %s8 = scalar_lea.sflag [#allocation3], 1
    %9 = vsyncpa %s8, 0
    %10 = vsyncpa [#allocation6], 0
    %s11 = scalar_lea.sflag [#allocation6], 1
    %12 = vsyncpa %s11, 0
    %13 = vsyncpa [#allocation4], 0
    %s14 = scalar_lea.sflag [#allocation4], 1
    %15 = vsyncpa %s14, 0
    loop: start=0, step=1, limit=6
    $region2: #{tpu_custom_call.1} parent=1 // loop_pre_header
      _
    $region3: #{tpu_custom_call.1} parent=1 // loop_header
      %s17 = sphi 0, %s21
      %p18 = scmp.ge.s32.totalorder %s17, 6
      %s24 = sphi 0, %s36
      %s25 = sphi 0, %s32
      %s26 = sphi 0, %s24
      %s27 = sphi 0, %s25
      %s28 = sphi 0, %s26
      %s29 = sphi 0, %s27
      %s41 = sphi 0, %s43
      %s44 = sphi 0, %s41
      %s45 = sphi 0, %s44
      %s61 = sphi 0, %s45
      %s67 = sphi 0, %s69
      %s70 = sphi 0, %s67
      %s71 = sphi 0, %s70
      %s87 = sphi 0, %s71
      %s95 = sphi 0, %s97
      %s98 = sphi 0, %s95
      %s99 = sphi 0, %s98
      %s115 = sphi 0, %s99
    $region4: #{tpu_custom_call.1} parent=1 // loop_header_branch
      %20 = sbr.rel (%p18) target = $region8
    $region5: #{tpu_custom_call.1} parent=1 // loop_body
      %s22 = ssub.s32 %s17, 1
      %s23 = ssub.s32 %s17, 2
      %s30 = sadd.s32 1, %s25
      %p31 = scmp.ge.s32.totalorder %s30, 1
      %s32 = scalar_select %p31, 0, %s30
      %s33 = sadd.s32 1, %s24
      %s34 = scalar_select %p31, %s33, %s24
      %p35 = scmp.ge.s32.totalorder %s34, 4
      %s36 = scalar_select %p35, 0, %s34
      %s37 = ssub.s32 %s24, %s36
      %s38 = ssub.s32 %s25, %s32
      %s39 = sor.u32 %s37, %s38
      %p40 = scmp.eq.s32.totalorder %s39, 0
      %s42 = sadd.s32 %s41, 1
      %s43 = scalar_select %p40, %s41, %s42
      %p46 = pneg %p40
      %p47 = scmp.eq.s32.totalorder %s17, 3
      %p48 = por %p46, %p47
      %p49 = scmp.ne.s32.totalorder %s41, %s44
      %p50 = scmp.eq.s32.totalorder %s17, 0
      %p51 = por %p49, %p50
      %p52 = scmp.ne.s32.totalorder %s41, %s44
      %p53 = scmp.eq.s32.totalorder %s22, 3
      %p54 = por %p52, %p53
      %p55 = scmp.ne.s32.totalorder %s44, %s45
      %p56 = scmp.eq.s32.totalorder %s22, 0
      %p57 = por %p55, %p56
      %p58 = scmp.ne.s32.totalorder %s44, %s45
      %p59 = scmp.eq.s32.totalorder %s23, 3
      %p60 = por %p58, %p59
      %p62 = scmp.ne.s32.totalorder %s45, %s61
      %p63 = scmp.eq.s32.totalorder %s23, 0
      %p64 = por %p62, %p63
      %s65 = ssub.s32 %s24, %s36
      %p66 = scmp.eq.s32.totalorder %s65, 0
      %s68 = sadd.s32 %s67, 1
      %s69 = scalar_select %p66, %s67, %s68
      %p72 = pneg %p66
      %p73 = scmp.eq.s32.totalorder %s17, 3
      %p74 = por %p72, %p73
      %p75 = scmp.ne.s32.totalorder %s67, %s70
      %p76 = scmp.eq.s32.totalorder %s17, 0
      %p77 = por %p75, %p76
      %p78 = scmp.ne.s32.totalorder %s67, %s70
      %p79 = scmp.eq.s32.totalorder %s22, 3
      %p80 = por %p78, %p79
      %p81 = scmp.ne.s32.totalorder %s70, %s71
      %p82 = scmp.eq.s32.totalorder %s22, 0
      %p83 = por %p81, %p82
      %p84 = scmp.ne.s32.totalorder %s70, %s71
      %p85 = scmp.eq.s32.totalorder %s23, 3
      %p86 = por %p84, %p85
      %p88 = scmp.ne.s32.totalorder %s71, %s87
      %p89 = scmp.eq.s32.totalorder %s23, 0
      %p90 = por %p88, %p89
      %s91 = ssub.s32 %s24, %s36
      %s92 = ssub.s32 %s25, %s32
      %s93 = sor.u32 %s91, %s92
      %p94 = scmp.eq.s32.totalorder %s93, 0
      %s96 = sadd.s32 %s95, 1
      %s97 = scalar_select %p94, %s95, %s96
      %p100 = pneg %p94
      %p101 = scmp.eq.s32.totalorder %s17, 3
      %p102 = por %p100, %p101
      %p103 = scmp.ne.s32.totalorder %s95, %s98
      %p104 = scmp.eq.s32.totalorder %s17, 0
      %p105 = por %p103, %p104
      %p106 = scmp.ne.s32.totalorder %s95, %s98
      %p107 = scmp.eq.s32.totalorder %s22, 3
      %p108 = por %p106, %p107
      %p109 = scmp.ne.s32.totalorder %s98, %s99
      %p110 = scmp.eq.s32.totalorder %s22, 0
      %p111 = por %p109, %p110
      %p112 = scmp.ne.s32.totalorder %s98, %s99
      %p113 = scmp.eq.s32.totalorder %s23, 3
      %p114 = por %p112, %p113
      %p116 = scmp.ne.s32.totalorder %s99, %s115
      %p117 = scmp.eq.s32.totalorder %s23, 0
      %p118 = por %p116, %p117
      %p119 = scmp.le.s32.totalorder 1, %s17
      %p120 = scmp.lt.s32.totalorder %s17, 5
      %p121 = pnand %p119, %p120
      %p122 = pneg %p121
      // Predicated region
      $region9: #{tpu_custom_call.1} parent=5 // pred_check
        _
      $region10: #{tpu_custom_call.1} parent=5 // pred_check_branch
        %124 = sbr.rel (%p121) target = $region12
      $region11: #{tpu_custom_call.1} parent=5 // pred_region
        %s125 = ssub.s32 %s17, 1
      $region12: #{tpu_custom_call.1} parent=5 // pred_fallthru
        _
      %p126 = scmp.lt.s32.totalorder %s17, 4
      // Predicated region
      $region13: #{tpu_custom_call.1} parent=5 // pred_check
        %p127 = pneg %p126
      $region14: #{tpu_custom_call.1} parent=5 // pred_check_branch
        %129 = sbr.rel (%p127) target = $region16
      $region15: #{tpu_custom_call.1} parent=5 // pred_region
        // Predicated region
        $region17: #{tpu_custom_call.1} parent=15 // pred_check
          %p130 = pneg %p51
        $region18: #{tpu_custom_call.1} parent=15 // pred_check_branch
          %132 = sbr.rel (%p130) target = $region20
        $region19: #{tpu_custom_call.1} parent=15 // pred_region
          %s133 = sand.u32 %s41, 1
          %s134 = scalar_lea.sflag [#allocation3], %s133
          %s135 = sand.u32 %s41, 1
          %s136 = smul.addr %s135, 512
          %s137 = scalar_lea.vmem [#allocation2], %s136
          %s138 = smul.u32 32, %s25
          %140 = vsyncadd %s134, 0
          %s141 = smul.addr %s138, 2
          %s142 = smul.addr %s24, 64
          %s143 = sadd.s32 %s141, %s142
          %s144 = smul.addr %s143, 8
          %s145 = scalar_lea.hbm %s0, %s144
          %s146 = sshll.u32 %s145, 4
          %s147 = int_to_ptr.hbm [resolvable:$true] %s146
          %s148 = sshll.u32 %s137, 4
          %s149 = int_to_ptr.vmem [resolvable:$true] %s148
          %154 = dma.hbm_to_vmem [thread:$0]  %s147, 8192, %s149, %s134, 256, 256, 16
        $region20: #{tpu_custom_call.1} parent=15 // pred_fallthru
          _
        // Predicated region
        $region21: #{tpu_custom_call.1} parent=15 // pred_check
          %p155 = pneg %p77
        $region22: #{tpu_custom_call.1} parent=15 // pred_check_branch
          %157 = sbr.rel (%p155) target = $region24
        $region23: #{tpu_custom_call.1} parent=15 // pred_region
          %s158 = sand.u32 %s67, 1
          %s159 = scalar_lea.sflag [#allocation6], %s158
          %s160 = sand.u32 %s67, 1
          %s161 = smul.addr %s160, 256
          %s162 = scalar_lea.vmem [#allocation5], %s161
          %164 = vsyncadd %s159, 0
          %s165 = smul.addr %s24, 32
          %s166 = smul.addr %s165, 8
          %s167 = scalar_lea.hbm %s1, %s166
          %s168 = sshll.u32 %s167, 4
          %s169 = int_to_ptr.hbm [resolvable:$true] %s168
          %s170 = sshll.u32 %s162, 4
          %s171 = int_to_ptr.vmem [resolvable:$true] %s170
          %176 = dma.hbm_to_vmem [thread:$0]  %s169, 4096, %s171, %s159, 128, 128, 8
        $region24: #{tpu_custom_call.1} parent=15 // pred_fallthru
          _
      $region16: #{tpu_custom_call.1} parent=5 // pred_fallthru
        _
      %p177 = scmp.le.s32.totalorder 1, %s17
      %p178 = scmp.lt.s32.totalorder %s17, 5
      %p179 = pnand %p177, %p178
      %p180 = pneg %p179
      // Predicated region
      $region25: #{tpu_custom_call.1} parent=5 // pred_check
        _
      $region26: #{tpu_custom_call.1} parent=5 // pred_check_branch
        %182 = sbr.rel (%p179) target = $region28
      $region27: #{tpu_custom_call.1} parent=5 // pred_region
        %s183 = ssub.s32 %s17, 1
        %s184 = sand.u32 %s44, 1
        %s185 = scalar_lea.sflag [#allocation3], %s184
        %s186 = sand.u32 %s44, 1
        %s187 = smul.addr %s186, 512
        %s188 = scalar_lea.vmem [#allocation2], %s187
        // Predicated region
        $region29: #{tpu_custom_call.1} parent=27 // pred_check
          %p189 = pneg %p57
        $region30: #{tpu_custom_call.1} parent=27 // pred_check_branch
          %191 = sbr.rel (%p189) target = $region32
        $region31: #{tpu_custom_call.1} parent=27 // pred_region
          %193 = dma.done %s185, 8192
        $region32: #{tpu_custom_call.1} parent=27 // pred_fallthru
          _
        %s194 = sand.u32 %s70, 1
        %s195 = scalar_lea.sflag [#allocation6], %s194
        %s196 = sand.u32 %s70, 1
        %s197 = smul.addr %s196, 256
        %s198 = scalar_lea.vmem [#allocation5], %s197
        // Predicated region
        $region33: #{tpu_custom_call.1} parent=27 // pred_check
          %p199 = pneg %p83
        $region34: #{tpu_custom_call.1} parent=27 // pred_check_branch
          %201 = sbr.rel (%p199) target = $region36
        $region35: #{tpu_custom_call.1} parent=27 // pred_region
          %203 = dma.done %s195, 4096
        $region36: #{tpu_custom_call.1} parent=27 // pred_fallthru
          _
        %s204 = sand.u32 %s44, 1
        %s205 = scalar_lea.sflag [#allocation3], %s204
        %s206 = sand.u32 %s44, 1
        %s207 = smul.addr %s206, 512
        %s208 = scalar_lea.vmem [#allocation2], %s207
        %p209 = pneg %p57
        %p210 = pneg %p54
        %s211 = sand.u32 %s70, 1
        %s212 = scalar_lea.sflag [#allocation6], %s211
        %s213 = sand.u32 %s70, 1
        %s214 = smul.addr %s213, 256
        %s215 = scalar_lea.vmem [#allocation5], %s214
        %p216 = pneg %p83
        %p217 = pneg %p80
        %p218 = pneg %p111
        %p219 = pneg %p108
        %s220 = sand.u32 %s98, 1
        %s221 = scalar_lea.sflag [#allocation4], %s220
        %s222 = sand.u32 %s98, 1
        %s223 = smul.addr %s222, 256
        %s224 = scalar_lea.vmem [#allocation7], %s223
        %s225 = smul.u32 32, %s27
        %s226 = smul.u32 32, %s27
        %v227 = vld [vmem:[%s188] sm:$0xff]
        %v228 = vld [vmem:[%s188 + $0x8] sm:$0xff]
        %v229 = vld [vmem:[%s188 + $0x10] sm:$0xff]
        %v230 = vld [vmem:[%s188 + $0x18] sm:$0xff]
        %v231 = vld [vmem:[%s188 + $0x20] sm:$0xff]
        %v232 = vld [vmem:[%s188 + $0x28] sm:$0xff]
        %v233 = vld [vmem:[%s188 + $0x30] sm:$0xff]
        %v234 = vld [vmem:[%s188 + $0x38] sm:$0xff]
        %v235 = vld [vmem:[%s188 + $0x40] sm:$0xff]
        %v236 = vld [vmem:[%s188 + $0x48] sm:$0xff]
        %v237 = vld [vmem:[%s188 + $0x50] sm:$0xff]
        %v238 = vld [vmem:[%s188 + $0x58] sm:$0xff]
        %v239 = vld [vmem:[%s188 + $0x60] sm:$0xff]
        %v240 = vld [vmem:[%s188 + $0x68] sm:$0xff]
        %v241 = vld [vmem:[%s188 + $0x70] sm:$0xff]
        %v242 = vld [vmem:[%s188 + $0x78] sm:$0xff]
        %v243 = vld [vmem:[%s188 + $0x80] sm:$0xff]
        %v244 = vld [vmem:[%s188 + $0x88] sm:$0xff]
        %v245 = vld [vmem:[%s188 + $0x90] sm:$0xff]
        %v246 = vld [vmem:[%s188 + $0x98] sm:$0xff]
        %v247 = vld [vmem:[%s188 + $0xa0] sm:$0xff]
        %v248 = vld [vmem:[%s188 + $0xa8] sm:$0xff]
        %v249 = vld [vmem:[%s188 + $0xb0] sm:$0xff]
        %v250 = vld [vmem:[%s188 + $0xb8] sm:$0xff]
        %v251 = vld [vmem:[%s188 + $0xc0] sm:$0xff]
        %v252 = vld [vmem:[%s188 + $0xc8] sm:$0xff]
        %v253 = vld [vmem:[%s188 + $0xd0] sm:$0xff]
        %v254 = vld [vmem:[%s188 + $0xd8] sm:$0xff]
        %v255 = vld [vmem:[%s188 + $0xe0] sm:$0xff]
        %v256 = vld [vmem:[%s188 + $0xe8] sm:$0xff]
        %v257 = vld [vmem:[%s188 + $0xf0] sm:$0xff]
        %v258 = vld [vmem:[%s188 + $0xf8] sm:$0xff]
        %v259 = vld [vmem:[%s188 + $0x100] sm:$0xff]
        %v260 = vld [vmem:[%s188 + $0x108] sm:$0xff]
        %v261 = vld [vmem:[%s188 + $0x110] sm:$0xff]
        %v262 = vld [vmem:[%s188 + $0x118] sm:$0xff]
        %v263 = vld [vmem:[%s188 + $0x120] sm:$0xff]
        %v264 = vld [vmem:[%s188 + $0x128] sm:$0xff]
        %v265 = vld [vmem:[%s188 + $0x130] sm:$0xff]
        %v266 = vld [vmem:[%s188 + $0x138] sm:$0xff]
        %v267 = vld [vmem:[%s188 + $0x140] sm:$0xff]
        %v268 = vld [vmem:[%s188 + $0x148] sm:$0xff]
        %v269 = vld [vmem:[%s188 + $0x150] sm:$0xff]
        %v270 = vld [vmem:[%s188 + $0x158] sm:$0xff]
        %v271 = vld [vmem:[%s188 + $0x160] sm:$0xff]
        %v272 = vld [vmem:[%s188 + $0x168] sm:$0xff]
        %v273 = vld [vmem:[%s188 + $0x170] sm:$0xff]
        %v274 = vld [vmem:[%s188 + $0x178] sm:$0xff]
        %v275 = vld [vmem:[%s188 + $0x180] sm:$0xff]
        %v276 = vld [vmem:[%s188 + $0x188] sm:$0xff]
        %v277 = vld [vmem:[%s188 + $0x190] sm:$0xff]
        %v278 = vld [vmem:[%s188 + $0x198] sm:$0xff]
        %v279 = vld [vmem:[%s188 + $0x1a0] sm:$0xff]
        %v280 = vld [vmem:[%s188 + $0x1a8] sm:$0xff]
        %v281 = vld [vmem:[%s188 + $0x1b0] sm:$0xff]
        %v282 = vld [vmem:[%s188 + $0x1b8] sm:$0xff]
        %v283 = vld [vmem:[%s188 + $0x1c0] sm:$0xff]
        %v284 = vld [vmem:[%s188 + $0x1c8] sm:$0xff]
        %v285 = vld [vmem:[%s188 + $0x1d0] sm:$0xff]
        %v286 = vld [vmem:[%s188 + $0x1d8] sm:$0xff]
        %v287 = vld [vmem:[%s188 + $0x1e0] sm:$0xff]
        %v288 = vld [vmem:[%s188 + $0x1e8] sm:$0xff]
        %v289 = vld [vmem:[%s188 + $0x1f0] sm:$0xff]
        %v290 = vld [vmem:[%s188 + $0x1f8] sm:$0xff]
        %v291 = vld [vmem:[%s198] sm:$0xff]
        %v292 = vld [vmem:[%s198 + $0x8] sm:$0xff]
        %v293 = vld [vmem:[%s198 + $0x10] sm:$0xff]
        %v294 = vld [vmem:[%s198 + $0x18] sm:$0xff]
        %v295 = vld [vmem:[%s198 + $0x20] sm:$0xff]
        %v296 = vld [vmem:[%s198 + $0x28] sm:$0xff]
        %v297 = vld [vmem:[%s198 + $0x30] sm:$0xff]
        %v298 = vld [vmem:[%s198 + $0x38] sm:$0xff]
        %v299 = vld [vmem:[%s198 + $0x40] sm:$0xff]
        %v300 = vld [vmem:[%s198 + $0x48] sm:$0xff]
        %v301 = vld [vmem:[%s198 + $0x50] sm:$0xff]
        %v302 = vld [vmem:[%s198 + $0x58] sm:$0xff]
        %v303 = vld [vmem:[%s198 + $0x60] sm:$0xff]
        %v304 = vld [vmem:[%s198 + $0x68] sm:$0xff]
        %v305 = vld [vmem:[%s198 + $0x70] sm:$0xff]
        %v306 = vld [vmem:[%s198 + $0x78] sm:$0xff]
        %v307 = vld [vmem:[%s198 + $0x80] sm:$0xff]
        %v308 = vld [vmem:[%s198 + $0x88] sm:$0xff]
        %v309 = vld [vmem:[%s198 + $0x90] sm:$0xff]
        %v310 = vld [vmem:[%s198 + $0x98] sm:$0xff]
        %v311 = vld [vmem:[%s198 + $0xa0] sm:$0xff]
        %v312 = vld [vmem:[%s198 + $0xa8] sm:$0xff]
        %v313 = vld [vmem:[%s198 + $0xb0] sm:$0xff]
        %v314 = vld [vmem:[%s198 + $0xb8] sm:$0xff]
        %v315 = vld [vmem:[%s198 + $0xc0] sm:$0xff]
        %v316 = vld [vmem:[%s198 + $0xc8] sm:$0xff]
        %v317 = vld [vmem:[%s198 + $0xd0] sm:$0xff]
        %v318 = vld [vmem:[%s198 + $0xd8] sm:$0xff]
        %v319 = vld [vmem:[%s198 + $0xe0] sm:$0xff]
        %v320 = vld [vmem:[%s198 + $0xe8] sm:$0xff]
        %v321 = vld [vmem:[%s198 + $0xf0] sm:$0xff]
        %v322 = vld [vmem:[%s198 + $0xf8] sm:$0xff]
        %323 = vmatpush.msra.mxu0 %v306
        %324 = vmatpush.msra.mxu0 %v305
        %325 = vmatpush.msra.mxu0 %v304
        %326 = vmatpush.msra.mxu0 %v303
        %327 = vmatpush.msra.mxu0 %v302
        %328 = vmatpush.msra.mxu0 %v301
        %329 = vmatpush.msra.mxu0 %v300
        %330 = vmatpush.msra.mxu0 %v299
        %331 = vmatpush.msra.mxu0 %v298
        %332 = vmatpush.msra.mxu0 %v297
        %333 = vmatpush.msra.mxu0 %v296
        %334 = vmatpush.msra.mxu0 %v295
        %335 = vmatpush.msra.mxu0 %v294
        %336 = vmatpush.msra.mxu0 %v293
        %337 = vmatpush.msra.mxu0 %v292
        %338 = vmatpush.msra.mxu0 %v291
        %339 = vmatmul.f32.gmra.mxu0 %v227
        %v340 = vpop.f32.mrf.mxu0
        %v341 = vadd.f32 0.0, %v340
        %342 = vmatmul.f32.gmra.mxu0 %v229
        %v343 = vpop.f32.mrf.mxu0
        %v344 = vadd.f32 0.0, %v343
        %345 = vmatmul.f32.gmra.mxu0 %v231
        %v346 = vpop.f32.mrf.mxu0
        %v347 = vadd.f32 0.0, %v346
        %348 = vmatmul.f32.gmra.mxu0 %v233
        %v349 = vpop.f32.mrf.mxu0
        %v350 = vadd.f32 0.0, %v349
        %351 = vmatmul.f32.gmra.mxu0 %v235
        %v352 = vpop.f32.mrf.mxu0
        %v353 = vadd.f32 0.0, %v352
        %354 = vmatmul.f32.gmra.mxu0 %v237
        %v355 = vpop.f32.mrf.mxu0
        %v356 = vadd.f32 0.0, %v355
        %357 = vmatmul.f32.gmra.mxu0 %v239
        %v358 = vpop.f32.mrf.mxu0
        %v359 = vadd.f32 0.0, %v358
        %360 = vmatmul.f32.gmra.mxu0 %v241
        %v361 = vpop.f32.mrf.mxu0
        %v362 = vadd.f32 0.0, %v361
        %363 = vmatmul.f32.gmra.mxu0 %v243
        %v364 = vpop.f32.mrf.mxu0
        %v365 = vadd.f32 0.0, %v364
        %366 = vmatmul.f32.gmra.mxu0 %v245
        %v367 = vpop.f32.mrf.mxu0
        %v368 = vadd.f32 0.0, %v367
        %369 = vmatmul.f32.gmra.mxu0 %v247
        %v370 = vpop.f32.mrf.mxu0
        %v371 = vadd.f32 0.0, %v370
        %372 = vmatmul.f32.gmra.mxu0 %v249
        %v373 = vpop.f32.mrf.mxu0
        %v374 = vadd.f32 0.0, %v373
        %375 = vmatmul.f32.gmra.mxu0 %v251
        %v376 = vpop.f32.mrf.mxu0
        %v377 = vadd.f32 0.0, %v376
        %378 = vmatmul.f32.gmra.mxu0 %v253
        %v379 = vpop.f32.mrf.mxu0
        %v380 = vadd.f32 0.0, %v379
        %381 = vmatmul.f32.gmra.mxu0 %v255
        %v382 = vpop.f32.mrf.mxu0
        %v383 = vadd.f32 0.0, %v382
        %384 = vmatmul.f32.gmra.mxu0 %v257
        %v385 = vpop.f32.mrf.mxu0
        %v386 = vadd.f32 0.0, %v385
        %387 = vmatmul.f32.gmra.mxu0 %v259
        %v388 = vpop.f32.mrf.mxu0
        %v389 = vadd.f32 0.0, %v388
        %390 = vmatmul.f32.gmra.mxu0 %v261
        %v391 = vpop.f32.mrf.mxu0
        %v392 = vadd.f32 0.0, %v391
        %393 = vmatmul.f32.gmra.mxu0 %v263
        %v394 = vpop.f32.mrf.mxu0
        %v395 = vadd.f32 0.0, %v394
        %396 = vmatmul.f32.gmra.mxu0 %v265
        %v397 = vpop.f32.mrf.mxu0
        %v398 = vadd.f32 0.0, %v397
        %399 = vmatmul.f32.gmra.mxu0 %v267
        %v400 = vpop.f32.mrf.mxu0
        %v401 = vadd.f32 0.0, %v400
        %402 = vmatmul.f32.gmra.mxu0 %v269
        %v403 = vpop.f32.mrf.mxu0
        %v404 = vadd.f32 0.0, %v403
        %405 = vmatmul.f32.gmra.mxu0 %v271
        %v406 = vpop.f32.mrf.mxu0
        %v407 = vadd.f32 0.0, %v406
        %408 = vmatmul.f32.gmra.mxu0 %v273
        %v409 = vpop.f32.mrf.mxu0
        %v410 = vadd.f32 0.0, %v409
        %411 = vmatmul.f32.gmra.mxu0 %v275
        %v412 = vpop.f32.mrf.mxu0
        %v413 = vadd.f32 0.0, %v412
        %414 = vmatmul.f32.gmra.mxu0 %v277
        %v415 = vpop.f32.mrf.mxu0
        %v416 = vadd.f32 0.0, %v415
        %417 = vmatmul.f32.gmra.mxu0 %v279
        %v418 = vpop.f32.mrf.mxu0
        %v419 = vadd.f32 0.0, %v418
        %420 = vmatmul.f32.gmra.mxu0 %v281
        %v421 = vpop.f32.mrf.mxu0
        %v422 = vadd.f32 0.0, %v421
        %423 = vmatmul.f32.gmra.mxu0 %v283
        %v424 = vpop.f32.mrf.mxu0
        %v425 = vadd.f32 0.0, %v424
        %426 = vmatmul.f32.gmra.mxu0 %v285
        %v427 = vpop.f32.mrf.mxu0
        %v428 = vadd.f32 0.0, %v427
        %429 = vmatmul.f32.gmra.mxu0 %v287
        %v430 = vpop.f32.mrf.mxu0
        %v431 = vadd.f32 0.0, %v430
        %432 = vmatmul.f32.gmra.mxu0 %v289
        %v433 = vpop.f32.mrf.mxu0
        %v434 = vadd.f32 0.0, %v433
        %435 = vdwg.mxu0
        %436 = vmatpush.msra.mxu0 %v322
        %437 = vmatpush.msra.mxu0 %v321
        %438 = vmatpush.msra.mxu0 %v320
        %439 = vmatpush.msra.mxu0 %v319
        %440 = vmatpush.msra.mxu0 %v318
        %441 = vmatpush.msra.mxu0 %v317
        %442 = vmatpush.msra.mxu0 %v316
        %443 = vmatpush.msra.mxu0 %v315
        %444 = vmatpush.msra.mxu0 %v314
        %445 = vmatpush.msra.mxu0 %v313
        %446 = vmatpush.msra.mxu0 %v312
        %447 = vmatpush.msra.mxu0 %v311
        %448 = vmatpush.msra.mxu0 %v310
        %449 = vmatpush.msra.mxu0 %v309
        %450 = vmatpush.msra.mxu0 %v308
        %451 = vmatpush.msra.mxu0 %v307
        %452 = vmatmul.f32.gmra.mxu0 %v228
        %v453 = vpop.f32.mrf.mxu0
        %v454 = vadd.f32 %v341, %v453
        %455 = vmatmul.f32.gmra.mxu0 %v230
        %v456 = vpop.f32.mrf.mxu0
        %v457 = vadd.f32 %v344, %v456
        %458 = vmatmul.f32.gmra.mxu0 %v232
        %v459 = vpop.f32.mrf.mxu0
        %v460 = vadd.f32 %v347, %v459
        %461 = vmatmul.f32.gmra.mxu0 %v234
        %v462 = vpop.f32.mrf.mxu0
        %v463 = vadd.f32 %v350, %v462
        %464 = vmatmul.f32.gmra.mxu0 %v236
        %v465 = vpop.f32.mrf.mxu0
        %v466 = vadd.f32 %v353, %v465
        %467 = vmatmul.f32.gmra.mxu0 %v238
        %v468 = vpop.f32.mrf.mxu0
        %v469 = vadd.f32 %v356, %v468
        %470 = vmatmul.f32.gmra.mxu0 %v240
        %v471 = vpop.f32.mrf.mxu0
        %v472 = vadd.f32 %v359, %v471
        %473 = vmatmul.f32.gmra.mxu0 %v242
        %v474 = vpop.f32.mrf.mxu0
        %v475 = vadd.f32 %v362, %v474
        %476 = vmatmul.f32.gmra.mxu0 %v244
        %v477 = vpop.f32.mrf.mxu0
        %v478 = vadd.f32 %v365, %v477
        %479 = vmatmul.f32.gmra.mxu0 %v246
        %v480 = vpop.f32.mrf.mxu0
        %v481 = vadd.f32 %v368, %v480
        %482 = vmatmul.f32.gmra.mxu0 %v248
        %v483 = vpop.f32.mrf.mxu0
        %v484 = vadd.f32 %v371, %v483
        %485 = vmatmul.f32.gmra.mxu0 %v250
        %v486 = vpop.f32.mrf.mxu0
        %v487 = vadd.f32 %v374, %v486
        %488 = vmatmul.f32.gmra.mxu0 %v252
        %v489 = vpop.f32.mrf.mxu0
        %v490 = vadd.f32 %v377, %v489
        %491 = vmatmul.f32.gmra.mxu0 %v254
        %v492 = vpop.f32.mrf.mxu0
        %v493 = vadd.f32 %v380, %v492
        %494 = vmatmul.f32.gmra.mxu0 %v256
        %v495 = vpop.f32.mrf.mxu0
        %v496 = vadd.f32 %v383, %v495
        %497 = vmatmul.f32.gmra.mxu0 %v258
        %v498 = vpop.f32.mrf.mxu0
        %v499 = vadd.f32 %v386, %v498
        %500 = vmatmul.f32.gmra.mxu0 %v260
        %v501 = vpop.f32.mrf.mxu0
        %v502 = vadd.f32 %v389, %v501
        %503 = vmatmul.f32.gmra.mxu0 %v262
        %v504 = vpop.f32.mrf.mxu0
        %v505 = vadd.f32 %v392, %v504
        %506 = vmatmul.f32.gmra.mxu0 %v264
        %v507 = vpop.f32.mrf.mxu0
        %v508 = vadd.f32 %v395, %v507
        %509 = vmatmul.f32.gmra.mxu0 %v266
        %v510 = vpop.f32.mrf.mxu0
        %v511 = vadd.f32 %v398, %v510
        %512 = vmatmul.f32.gmra.mxu0 %v268
        %v513 = vpop.f32.mrf.mxu0
        %v514 = vadd.f32 %v401, %v513
        %515 = vmatmul.f32.gmra.mxu0 %v270
        %v516 = vpop.f32.mrf.mxu0
        %v517 = vadd.f32 %v404, %v516
        %518 = vmatmul.f32.gmra.mxu0 %v272
        %v519 = vpop.f32.mrf.mxu0
        %v520 = vadd.f32 %v407, %v519
        %521 = vmatmul.f32.gmra.mxu0 %v274
        %v522 = vpop.f32.mrf.mxu0
        %v523 = vadd.f32 %v410, %v522
        %524 = vmatmul.f32.gmra.mxu0 %v276
        %v525 = vpop.f32.mrf.mxu0
        %v526 = vadd.f32 %v413, %v525
        %527 = vmatmul.f32.gmra.mxu0 %v278
        %v528 = vpop.f32.mrf.mxu0
        %v529 = vadd.f32 %v416, %v528
        %530 = vmatmul.f32.gmra.mxu0 %v280
        %v531 = vpop.f32.mrf.mxu0
        %v532 = vadd.f32 %v419, %v531
        %533 = vmatmul.f32.gmra.mxu0 %v282
        %v534 = vpop.f32.mrf.mxu0
        %v535 = vadd.f32 %v422, %v534
        %536 = vmatmul.f32.gmra.mxu0 %v284
        %v537 = vpop.f32.mrf.mxu0
        %v538 = vadd.f32 %v425, %v537
        %539 = vmatmul.f32.gmra.mxu0 %v286
        %v540 = vpop.f32.mrf.mxu0
        %v541 = vadd.f32 %v428, %v540
        %542 = vmatmul.f32.gmra.mxu0 %v288
        %v543 = vpop.f32.mrf.mxu0
        %v544 = vadd.f32 %v431, %v543
        %545 = vmatmul.f32.gmra.mxu0 %v290
        %v546 = vpop.f32.mrf.mxu0
        %v547 = vadd.f32 %v434, %v546
        %548 = vdwg.mxu0
        %549 = vst [vmem:[%s224] sm:$0xff] %v454
        %550 = vst [vmem:[%s224 + $0x8] sm:$0xff] %v457
        %551 = vst [vmem:[%s224 + $0x10] sm:$0xff] %v460
        %552 = vst [vmem:[%s224 + $0x18] sm:$0xff] %v463
        %553 = vst [vmem:[%s224 + $0x20] sm:$0xff] %v466
        %554 = vst [vmem:[%s224 + $0x28] sm:$0xff] %v469
        %555 = vst [vmem:[%s224 + $0x30] sm:$0xff] %v472
        %556 = vst [vmem:[%s224 + $0x38] sm:$0xff] %v475
        %557 = vst [vmem:[%s224 + $0x40] sm:$0xff] %v478
        %558 = vst [vmem:[%s224 + $0x48] sm:$0xff] %v481
        %559 = vst [vmem:[%s224 + $0x50] sm:$0xff] %v484
        %560 = vst [vmem:[%s224 + $0x58] sm:$0xff] %v487
        %561 = vst [vmem:[%s224 + $0x60] sm:$0xff] %v490
        %562 = vst [vmem:[%s224 + $0x68] sm:$0xff] %v493
        %563 = vst [vmem:[%s224 + $0x70] sm:$0xff] %v496
        %564 = vst [vmem:[%s224 + $0x78] sm:$0xff] %v499
        %565 = vst [vmem:[%s224 + $0x80] sm:$0xff] %v502
        %566 = vst [vmem:[%s224 + $0x88] sm:$0xff] %v505
        %567 = vst [vmem:[%s224 + $0x90] sm:$0xff] %v508
        %568 = vst [vmem:[%s224 + $0x98] sm:$0xff] %v511
        %569 = vst [vmem:[%s224 + $0xa0] sm:$0xff] %v514
        %570 = vst [vmem:[%s224 + $0xa8] sm:$0xff] %v517
        %571 = vst [vmem:[%s224 + $0xb0] sm:$0xff] %v520
        %572 = vst [vmem:[%s224 + $0xb8] sm:$0xff] %v523
        %573 = vst [vmem:[%s224 + $0xc0] sm:$0xff] %v526
        %574 = vst [vmem:[%s224 + $0xc8] sm:$0xff] %v529
        %575 = vst [vmem:[%s224 + $0xd0] sm:$0xff] %v532
        %576 = vst [vmem:[%s224 + $0xd8] sm:$0xff] %v535
        %577 = vst [vmem:[%s224 + $0xe0] sm:$0xff] %v538
        %578 = vst [vmem:[%s224 + $0xe8] sm:$0xff] %v541
        %579 = vst [vmem:[%s224 + $0xf0] sm:$0xff] %v544
        %580 = vst [vmem:[%s224 + $0xf8] sm:$0xff] %v547
        %s581 = sand.u32 %s98, 1
        %s582 = scalar_lea.sflag [#allocation4], %s581
        %s583 = sand.u32 %s98, 1
        %s584 = smul.addr %s583, 256
        %s585 = scalar_lea.vmem [#allocation7], %s584
        // Predicated region
        $region37: #{tpu_custom_call.1} parent=27 // pred_check
          %p586 = pneg %p108
        $region38: #{tpu_custom_call.1} parent=27 // pred_check_branch
          %588 = sbr.rel (%p586) target = $region40
        $region39: #{tpu_custom_call.1} parent=27 // pred_region
          %s589 = smul.u32 32, %s27
          %591 = vsyncadd %s582, 0
          %s592 = smul.addr %s26, 32
          %s593 = sadd.s32 %s589, %s592
          %s594 = smul.addr %s593, 8
          %s595 = scalar_lea.hbm %s2, %s594
          %s596 = sshll.u32 %s585, 4
          %s597 = int_to_ptr.vmem [resolvable:$true] %s596
          %s598 = sshll.u32 %s595, 4
          %s599 = int_to_ptr.hbm [resolvable:$true] %s598
          %604 = dma.vmem_to_hbm [thread:$0]  %s597, 4096, %s599, %s582, 128, 128, 8
        $region40: #{tpu_custom_call.1} parent=27 // pred_fallthru
          _
      $region28: #{tpu_custom_call.1} parent=5 // pred_fallthru
        _
      %p605 = scmp.le.s32.totalorder 2, %s17
      // Predicated region
      $region41: #{tpu_custom_call.1} parent=5 // pred_check
        %p606 = pneg %p605
      $region42: #{tpu_custom_call.1} parent=5 // pred_check_branch
        %608 = sbr.rel (%p606) target = $region44
      $region43: #{tpu_custom_call.1} parent=5 // pred_region
        %s609 = ssub.s32 %s17, 2
        // Predicated region
        $region45: #{tpu_custom_call.1} parent=43 // pred_check
          %p610 = pneg %p114
        $region46: #{tpu_custom_call.1} parent=43 // pred_check_branch
          %612 = sbr.rel (%p610) target = $region48
        $region47: #{tpu_custom_call.1} parent=43 // pred_region
          %s613 = sand.u32 %s99, 1
          %s614 = scalar_lea.sflag [#allocation4], %s613
          %s615 = sand.u32 %s99, 1
          %s616 = smul.addr %s615, 256
          %s617 = scalar_lea.vmem [#allocation7], %s616
          %619 = dma.done %s614, 4096
        $region48: #{tpu_custom_call.1} parent=43 // pred_fallthru
          _
      $region44: #{tpu_custom_call.1} parent=5 // pred_fallthru
        _
    $region6: #{tpu_custom_call.1} parent=1 // loop_footer
      %s21 = sadd.s32 1, %s17
    $region7: #{tpu_custom_call.1} parent=1 // loop_footer_branch
      %16 = sbr.rel target = $region3
    $region8: #{tpu_custom_call.1} parent=1 // loop_exit
      _
    %620 = vsyncpa [#allocation3], 1
    %s621 = scalar_lea.sflag [#allocation3], 1
    %622 = vsyncpa %s621, 1
    %623 = vsyncpa [#allocation6], 1
    %s624 = scalar_lea.sflag [#allocation6], 1
    %625 = vsyncpa %s624, 1
    %626 = vsyncpa [#allocation4], 1
    %s627 = scalar_lea.sflag [#allocation4], 1
    %628 = vsyncpa %s627, 1

</llo_original>
